<compile_context>
chip_gen: v7x
topology: tpu7x:2x2x1
jax: 0.10.0
libtpu: 0.0.40
codegen_flags: <defaults>
</compile_context>

<pallas_src>
import functools

import jax
import jax.numpy as jnp
from jax.experimental import pallas as pl
from jax.experimental.pallas import tpu as pltpu


# ----------------------------------------------------------------------------
# Fused kernel: convA(3x3, Cin->Cmid)+bias+ReLU -> convB(3x3, Cmid->Cout)+bias
#   activations: 2-D "[row=(n,h), lane=(w,c)]" slabs, entirely in vregs
#   w-direction taps + zero padding: folded into banded weights (one-time prep)
#   h-direction taps + zero padding: pltpu.roll(+-1 row) + boundary-row mask
# ----------------------------------------------------------------------------
def _ensemble_kernel(x_ref, wA_ref, wB_ref, out_ref, *, H):
    # x_ref  : [N*H, W*Cin ]           f32, rows (n, h), lanes (w, ci)
    # wA_ref : [3*W*Cin  + 1, W*Cmid]  bf16 banded weights, last row = bias
    # wB_ref : [3*W*Cmid + 1, W*Cout]  bf16 banded weights, last row = bias
    # out_ref: [N*H, W*Cout]           f32
    nh, wc_in = x_ref.shape
    wc_mid = wA_ref.shape[1]

    # Image-boundary row masks (rows are (n, h); h = row % H).
    h_ids = jax.lax.broadcasted_iota(jnp.int32, (nh, wc_mid), 0) % H
    top = h_ids == 0          # h == 0     : no h-1 neighbour inside the image
    bot = h_ids == H - 1      # h == H - 1 : no h+1 neighbour inside the image

    def shift_up(y):          # y[r] <- y[r-1]; zero at h == 0    ("h-1" tap)
        return jnp.where(top, 0.0, pltpu.roll(y, 1, axis=0))

    def shift_dn(y):          # y[r] <- y[r+1]; zero at h == H-1  ("h+1" tap)
        return jnp.where(bot, 0.0, pltpu.roll(y, nh - 1, axis=0))

    # ---- layer A -------------------------------------------------------------
    # shift(x) @ W_kh == shift(x @ W_kh): shift the 128-lane partial products so
    # every roll stays on an (8,128)-aligned f32 array (x itself is 64 lanes).
    x_b = x_ref[...].astype(wA_ref.dtype)                        # cast once

    def dot_a(kh):
        return jnp.dot(x_b, wA_ref[kh * wc_in:(kh + 1) * wc_in, :],
                       preferred_element_type=jnp.float32)       # [NH, W*Cmid] f32

    bias_a = wA_ref[3 * wc_in:3 * wc_in + 1, :].astype(jnp.float32)
    h1 = jnp.maximum(
        bias_a + shift_up(dot_a(0)) + dot_a(1) + shift_dn(dot_a(2)), 0.0)

    # ---- layer B -------------------------------------------------------------
    # h1 is [NH, W*Cmid] = 128 lanes -> roll the activation before the dots.
    acc = wB_ref[3 * wc_mid:3 * wc_mid + 1, :].astype(jnp.float32)   # bias [1, W*Cout]
    for kh, tap in enumerate((shift_up(h1), h1, shift_dn(h1))):      # unrolled
        acc = acc + jnp.dot(tap.astype(wB_ref.dtype),
                            wB_ref[kh * wc_mid:(kh + 1) * wc_mid, :],
                            preferred_element_type=jnp.float32)
    out_ref[...] = acc.astype(out_ref.dtype)


def _fused_ensemble_call(x2d, wA_big, wB_big, H):
    NH, WCin = x2d.shape
    WCmid = wA_big.shape[1]
    WCout = wB_big.shape[1]
    flops = 2 * NH * (3 * WCin) * WCmid + 2 * NH * (3 * WCmid) * WCout
    nbytes = (x2d.size * x2d.dtype.itemsize
              + wA_big.size * wA_big.dtype.itemsize
              + wB_big.size * wB_big.dtype.itemsize
              + NH * WCout * 4)
    return pl.pallas_call(
        functools.partial(_ensemble_kernel, H=H),
        out_shape=jax.ShapeDtypeStruct((NH, WCout), jnp.float32),
        grid=(1,),                                   # whole problem = one step
        in_specs=[
            pl.BlockSpec((NH, WCin), lambda i: (0, 0)),
            pl.BlockSpec(wA_big.shape, lambda i: (0, 0)),
            pl.BlockSpec(wB_big.shape, lambda i: (0, 0)),
        ],
        out_specs=pl.BlockSpec((NH, WCout), lambda i: (0, 0)),
        compiler_params=pltpu.CompilerParams(dimension_semantics=("arbitrary",)),
        cost_estimate=pl.CostEstimate(flops=int(flops), transcendentals=0,
                                      bytes_accessed=int(nbytes)),
    )(x2d, wA_big, wB_big)


# ----------------------------------------------------------------------------
# One-time weight prep (hoisted out of the per-forward path).
# Banded matrix encodes the kw taps AND the W-direction zero padding:
#   band[(kh, w_in, ci), (w_out, co)] = Wt[co, ci, kh, w_in - w_out + 1]
#                                       if 0 <= w_in - w_out + 1 < 3 else 0
# Last row = bias broadcast over w_out.
# ----------------------------------------------------------------------------
def _make_banded_weight(w_oihw, bias, W):
    Cout, Cin, KH, KW = w_oihw.shape
    w_k = jnp.transpose(w_oihw, (2, 3, 1, 0))                  # [KH, KW, Cin, Cout]
    w_in = jnp.arange(W)[:, None]
    w_out = jnp.arange(W)[None, :]
    kw = w_in - w_out + (KW // 2)                              # [W_in, W_out]
    valid = (kw >= 0) & (kw < KW)
    kw_c = jnp.clip(kw, 0, KW - 1)
    band = w_k[:, kw_c, :, :]                                  # [KH, W_in, W_out, Cin, Cout]
    band = jnp.where(valid[None, :, :, None, None], band, 0.0)
    band = jnp.transpose(band, (0, 1, 3, 2, 4))                # [KH, W_in, Cin, W_out, Cout]
    band = band.reshape(KH * W * Cin, W * Cout)
    bias_row = jnp.broadcast_to(bias, (W, Cout)).reshape(1, W * Cout)
    return jnp.concatenate([band, bias_row], axis=0)           # [3*W*Cin + 1, W*Cout]


def prepare_params(params, W, weight_dtype=jnp.bfloat16):
    """One-time prep.  bf16 halves the weight DMA, which is essentially all of
    the kernel's HBM traffic (input 8 KiB, output 8 KiB, weights ~190 KiB f32)."""
    return {
        "wA_big": _make_banded_weight(params["wA"], params["bA"], W).astype(weight_dtype),
        "wB_big": _make_banded_weight(params["wB"], params["bB"], W).astype(weight_dtype),
    }


# ----------------------------------------------------------------------------
# MyEnsemble forward:  x -> modelA(x) -> modelB(.)   (NCHW in / NCHW out)
# ----------------------------------------------------------------------------
def my_ensemble_forward(x_nchw, prepped):
    N, Cin, H, W = x_nchw.shape
    Cout = prepped["wB_big"].shape[1] // W
    # Layout plumbing only (single transpose+reshape fusion per side under jit);
    # the H zero-padding of v2 is gone -- boundary rows are handled in-kernel.
    x2d = jnp.transpose(x_nchw, (0, 2, 3, 1)).reshape(N * H, W * Cin)
    out2d = _fused_ensemble_call(x2d, prepped["wA_big"], prepped["wB_big"], H)
    return jnp.transpose(out2d.reshape(N, H, W, Cout), (0, 3, 1, 2))   # -> NCHW


def init_params():
    """Deterministic synthetic parameters (not loaded from a checkpoint)."""
    kA, kB = jax.random.split(jax.random.PRNGKey(42))
    Cin, Cmid, Cout = 4, 8, 4
    wA = 0.1 * jax.random.normal(kA, (Cmid, Cin, 3, 3), dtype=jnp.float32)
    bA = jnp.linspace(-0.1, 0.1, Cmid, dtype=jnp.float32)
    wB = 0.1 * jax.random.normal(kB, (Cout, Cmid, 3, 3), dtype=jnp.float32)
    bB = jnp.linspace(-0.05, 0.05, Cout, dtype=jnp.float32)
    return {"wA": wA, "bA": bA, "wB": wB, "bB": bB}


# ----------------------------------------------------------------------------
# Pure-JAX reference (correctness check)
# ----------------------------------------------------------------------------
def _ref_conv3x3(x_nchw, w, b):
    y = jax.lax.conv_general_dilated(
        x_nchw, w, window_strides=(1, 1), padding="SAME",
        dimension_numbers=("NCHW", "OIHW", "NCHW"))
    return y + b.reshape(1, -1, 1, 1)


def my_ensemble_reference(x_nchw, params):
    h1 = jnp.maximum(_ref_conv3x3(x_nchw, params["wA"], params["bA"]), 0.0)
    return _ref_conv3x3(h1, params["wB"], params["bB"])


if __name__ == "__main__":
    key = jax.random.PRNGKey(0)
    x = jax.random.normal(key, (2, 4, 16, 16), dtype=jnp.float32)   # NCHW

    params = init_params()
    prepped = prepare_params(params, W=x.shape[-1])   # hoisted one-time prep

    fwd = jax.jit(my_ensemble_forward)
    out = jax.block_until_ready(fwd(x, prepped))

    ref = jax.block_until_ready(my_ensemble_reference(x, params))
    assert out.shape == (2, 4, 16, 16)
    max_err = float(jnp.max(jnp.abs(out - ref)))
    # bf16 weights/taps in the kernel vs pure-f32 reference -> relaxed from 1e-3.
    assert max_err < 2e-2, f"max abs err {max_err}"
    print("KERNEL_OK")
</pallas_src>

<mosaic_0001>
module attributes {stable_mosaic.version = 11 : i64} {
  func.func @_ensemble_kernel(%arg0: i32, %arg1: memref<32x64xf32, #tpu.memory_space<vmem>>, %arg2: memref<193x128xbf16, #tpu.memory_space<vmem>>, %arg3: memref<385x64xbf16, #tpu.memory_space<vmem>>, %arg4: memref<32x64xf32, #tpu.memory_space<vmem>>) attributes {dimension_semantics = [#tpu.dimension_semantics<arbitrary>], iteration_bounds = array<i64: 1>, scalar_prefetch = 0 : i64, scratch_operands = 0 : i64, tpu.core_type = #tpu.core_type<tc>, window_params = [{pipeline_mode = #tpu.pipeline_mode<synchronous>, transform_indices = @transform_0, window_bounds = array<i64: 32, 64>}, {pipeline_mode = #tpu.pipeline_mode<synchronous>, transform_indices = @transform_1, window_bounds = array<i64: 193, 128>}, {pipeline_mode = #tpu.pipeline_mode<synchronous>, transform_indices = @transform_2, window_bounds = array<i64: 385, 64>}, {pipeline_mode = #tpu.pipeline_mode<synchronous>, transform_indices = @transform_3, window_bounds = array<i64: 32, 64>}]} {
    %0 = tpu.iota {dimensions = array<i32: 0>} : vector<32x128xi32>
    %c16_i32 = arith.constant 16 : i32
    %c0_i32 = arith.constant 0 : i32
    %1 = arith.cmpi eq, %c16_i32, %c0_i32 : i32
    %c1_i32 = arith.constant 1 : i32
    %2 = arith.select %1, %c1_i32, %c16_i32 : i32
    %3 = vector.broadcast %2 : i32 to vector<32x128xi32>
    %4 = arith.remsi %0, %3 : vector<32x128xi32>
    %c0_i32_0 = arith.constant 0 : i32
    %5 = vector.broadcast %c0_i32_0 : i32 to vector<32x128xi32>
    %6 = arith.cmpi ne, %4, %5 : vector<32x128xi32>
    %c0_i32_1 = arith.constant 0 : i32
    %7 = vector.broadcast %c0_i32_1 : i32 to vector<32x128xi32>
    %8 = arith.cmpi slt, %4, %7 : vector<32x128xi32>
    %c0_i32_2 = arith.constant 0 : i32
    %9 = arith.cmpi slt, %2, %c0_i32_2 : i32
    %10 = vector.broadcast %9 : i1 to vector<32x128xi1>
    %11 = vector.broadcast %10 : vector<32x128xi1> to vector<32x128xi1>
    %12 = arith.xori %8, %11 : vector<32x128xi1>
    %13 = arith.andi %12, %6 : vector<32x128xi1>
    %14 = vector.broadcast %2 : i32 to vector<32x128xi32>
    %15 = arith.addi %4, %14 : vector<32x128xi32>
    %16 = arith.select %13, %15, %4 : vector<32x128xi1>, vector<32x128xi32>
    %c0_i32_3 = arith.constant 0 : i32
    %17 = vector.broadcast %c0_i32_3 : i32 to vector<32x128xi32>
    %18 = arith.cmpi eq, %16, %17 : vector<32x128xi32>
    %c15_i32 = arith.constant 15 : i32
    %19 = vector.broadcast %c15_i32 : i32 to vector<32x128xi32>
    %20 = arith.cmpi eq, %16, %19 : vector<32x128xi32>
    %c0 = arith.constant 0 : index
    %c0_4 = arith.constant 0 : index
    %21 = vector.load %arg1[%c0, %c0_4] : memref<32x64xf32, #tpu.memory_space<vmem>>, vector<32x64xf32>
    %22 = arith.truncf %21 : vector<32x64xf32> to vector<32x64xbf16>
    %c192 = arith.constant 192 : index
    %c0_5 = arith.constant 0 : index
    %23 = vector.load %arg2[%c192, %c0_5] : memref<193x128xbf16, #tpu.memory_space<vmem>>, vector<1x128xbf16>
    %24 = arith.extf %23 : vector<1x128xbf16> to vector<1x128xf32>
    %c0_6 = arith.constant 0 : index
    %c0_7 = arith.constant 0 : index
    %25 = vector.load %arg2[%c0_6, %c0_7] : memref<193x128xbf16, #tpu.memory_space<vmem>>, vector<64x128xbf16>
    %cst = arith.constant dense<0.000000e+00> : vector<32x128xf32>
    %26 = tpu.matmul %22, %25, %cst {dimension_numbers = #tpu.dot_dimension_numbers<[1], [0], [0], [1], [0, 0, 1, 1], [], []>} : vector<32x64xbf16>, vector<64x128xbf16>, vector<32x128xf32> -> vector<32x128xf32>
    %c1_i32_8 = arith.constant 1 : i32
    %27 = tpu.dynamic_rotate %26 by %c1_i32_8 dim 0 : vector<32x128xf32>, i32 -> vector<32x128xf32>
    %cst_9 = arith.constant 0.000000e+00 : f32
    %28 = vector.broadcast %cst_9 : f32 to vector<32x128xf32>
    %29 = arith.select %18, %28, %27 : vector<32x128xi1>, vector<32x128xf32>
    %30 = vector.broadcast %24 : vector<1x128xf32> to vector<32x128xf32>
    %31 = arith.addf %30, %29 : vector<32x128xf32>
    %c64 = arith.constant 64 : index
    %c0_10 = arith.constant 0 : index
    %32 = vector.load %arg2[%c64, %c0_10] : memref<193x128xbf16, #tpu.memory_space<vmem>>, vector<64x128xbf16>
    %cst_11 = arith.constant dense<0.000000e+00> : vector<32x128xf32>
    %33 = tpu.matmul %22, %32, %cst_11 {dimension_numbers = #tpu.dot_dimension_numbers<[1], [0], [0], [1], [0, 0, 1, 1], [], []>} : vector<32x64xbf16>, vector<64x128xbf16>, vector<32x128xf32> -> vector<32x128xf32>
    %34 = arith.addf %31, %33 : vector<32x128xf32>
    %c128 = arith.constant 128 : index
    %c0_12 = arith.constant 0 : index
    %35 = vector.load %arg2[%c128, %c0_12] : memref<193x128xbf16, #tpu.memory_space<vmem>>, vector<64x128xbf16>
    %cst_13 = arith.constant dense<0.000000e+00> : vector<32x128xf32>
    %36 = tpu.matmul %22, %35, %cst_13 {dimension_numbers = #tpu.dot_dimension_numbers<[1], [0], [0], [1], [0, 0, 1, 1], [], []>} : vector<32x64xbf16>, vector<64x128xbf16>, vector<32x128xf32> -> vector<32x128xf32>
    %c31_i32 = arith.constant 31 : i32
    %37 = tpu.dynamic_rotate %36 by %c31_i32 dim 0 : vector<32x128xf32>, i32 -> vector<32x128xf32>
    %cst_14 = arith.constant 0.000000e+00 : f32
    %38 = vector.broadcast %cst_14 : f32 to vector<32x128xf32>
    %39 = arith.select %20, %38, %37 : vector<32x128xi1>, vector<32x128xf32>
    %40 = arith.addf %34, %39 : vector<32x128xf32>
    %cst_15 = arith.constant 0.000000e+00 : f32
    %41 = vector.broadcast %cst_15 : f32 to vector<32x128xf32>
    %42 = arith.maximumf %40, %41 : vector<32x128xf32>
    %c384 = arith.constant 384 : index
    %c0_16 = arith.constant 0 : index
    %43 = vector.load %arg3[%c384, %c0_16] : memref<385x64xbf16, #tpu.memory_space<vmem>>, vector<1x64xbf16>
    %44 = arith.extf %43 : vector<1x64xbf16> to vector<1x64xf32>
    %c1_i32_17 = arith.constant 1 : i32
    %45 = tpu.dynamic_rotate %42 by %c1_i32_17 dim 0 : vector<32x128xf32>, i32 -> vector<32x128xf32>
    %cst_18 = arith.constant 0.000000e+00 : f32
    %46 = vector.broadcast %cst_18 : f32 to vector<32x128xf32>
    %47 = arith.select %18, %46, %45 : vector<32x128xi1>, vector<32x128xf32>
    %c31_i32_19 = arith.constant 31 : i32
    %48 = tpu.dynamic_rotate %42 by %c31_i32_19 dim 0 : vector<32x128xf32>, i32 -> vector<32x128xf32>
    %cst_20 = arith.constant 0.000000e+00 : f32
    %49 = vector.broadcast %cst_20 : f32 to vector<32x128xf32>
    %50 = arith.select %20, %49, %48 : vector<32x128xi1>, vector<32x128xf32>
    %51 = arith.truncf %47 : vector<32x128xf32> to vector<32x128xbf16>
    %c0_21 = arith.constant 0 : index
    %c0_22 = arith.constant 0 : index
    %52 = vector.load %arg3[%c0_21, %c0_22] : memref<385x64xbf16, #tpu.memory_space<vmem>>, vector<128x64xbf16>
    %cst_23 = arith.constant dense<0.000000e+00> : vector<32x64xf32>
    %53 = tpu.matmul %51, %52, %cst_23 {dimension_numbers = #tpu.dot_dimension_numbers<[1], [0], [0], [1], [0, 0, 1, 1], [], []>} : vector<32x128xbf16>, vector<128x64xbf16>, vector<32x64xf32> -> vector<32x64xf32>
    %54 = vector.broadcast %44 : vector<1x64xf32> to vector<32x64xf32>
    %55 = arith.addf %54, %53 : vector<32x64xf32>
    %56 = arith.truncf %42 : vector<32x128xf32> to vector<32x128xbf16>
    %c128_24 = arith.constant 128 : index
    %c0_25 = arith.constant 0 : index
    %57 = vector.load %arg3[%c128_24, %c0_25] : memref<385x64xbf16, #tpu.memory_space<vmem>>, vector<128x64xbf16>
    %cst_26 = arith.constant dense<0.000000e+00> : vector<32x64xf32>
    %58 = tpu.matmul %56, %57, %cst_26 {dimension_numbers = #tpu.dot_dimension_numbers<[1], [0], [0], [1], [0, 0, 1, 1], [], []>} : vector<32x128xbf16>, vector<128x64xbf16>, vector<32x64xf32> -> vector<32x64xf32>
    %59 = arith.addf %55, %58 : vector<32x64xf32>
    %60 = arith.truncf %50 : vector<32x128xf32> to vector<32x128xbf16>
    %c256 = arith.constant 256 : index
    %c0_27 = arith.constant 0 : index
    %61 = vector.load %arg3[%c256, %c0_27] : memref<385x64xbf16, #tpu.memory_space<vmem>>, vector<128x64xbf16>
    %cst_28 = arith.constant dense<0.000000e+00> : vector<32x64xf32>
    %62 = tpu.matmul %60, %61, %cst_28 {dimension_numbers = #tpu.dot_dimension_numbers<[1], [0], [0], [1], [0, 0, 1, 1], [], []>} : vector<32x128xbf16>, vector<128x64xbf16>, vector<32x64xf32> -> vector<32x64xf32>
    %63 = arith.addf %59, %62 : vector<32x64xf32>
    %c0_29 = arith.constant 0 : index
    %c0_30 = arith.constant 0 : index
    %64 = vector.load %arg4[%c0_29, %c0_30] : memref<32x64xf32, #tpu.memory_space<vmem>>, vector<32x64xf32>
    tpu.vector_store %arg4[%c0_29, %c0_30], %63 {strides = array<i32>} : memref<32x64xf32, #tpu.memory_space<vmem>>, vector<32x64xf32>,
    return
  }
  func.func @transform_0(%arg0: i32) -> (i32, i32) {
    %c0_i32 = arith.constant 0 : i32
    %c0_i32_0 = arith.constant 0 : i32
    %c0_i32_1 = arith.constant 0 : i32
    return %c0_i32, %c0_i32_0 : i32, i32
  }
  func.func @transform_1(%arg0: i32) -> (i32, i32) {
    %c0_i32 = arith.constant 0 : i32
    %c0_i32_0 = arith.constant 0 : i32
    %c0_i32_1 = arith.constant 0 : i32
    return %c0_i32, %c0_i32_0 : i32, i32
  }
  func.func @transform_2(%arg0: i32) -> (i32, i32) {
    %c0_i32 = arith.constant 0 : i32
    %c0_i32_0 = arith.constant 0 : i32
    %c0_i32_1 = arith.constant 0 : i32
    return %c0_i32, %c0_i32_0 : i32, i32
  }
  func.func @transform_3(%arg0: i32) -> (i32, i32) {
    %c0_i32 = arith.constant 0 : i32
    %c0_i32_0 = arith.constant 0 : i32
    %c0_i32_1 = arith.constant 0 : i32
    return %c0_i32, %c0_i32_0 : i32, i32
  }
}

</mosaic_0001>

<llo_original>
// kernel: my_ensemble_forward.1
$region0: #{my_ensemble_forward.1}
  #allocation0 [shape = 'u32[]', space=smem, size = 0x4, offset = 0x4, fixed_abs, tag = 'smem constant byte address 0x4 - core index']
  #allocation1 [shape = 'u32[144,128]{1,0:T(1,128)}', space=vmem, size = 0x12000, scoped, tag = 'internal scratch']
  %s0 = inlined_call_operand.vmem [shape: f32[32,64], index: 0, kind: input, shape index: {}]
  %s1 = inlined_call_operand.vmem [shape: bf16[193,128], index: 1, kind: input, shape index: {}]
  %s2 = inlined_call_operand.vmem [shape: bf16[385,64], index: 2, kind: input, shape index: {}]
  %s3 = inlined_call_operand.vmem [shape: f32[32,64], index: 3, kind: output, shape index: {}]
  %s4 = sld [smem:[#allocation0]]
  $region22: #{my_ensemble_forward.1} parent=0
    _
  %s6 = ssub.s32 1, %s4
  %s7 = scalar_select 0, %s6, %s4
  // Predicated region
  $region2: #{my_ensemble_forward.1} parent=0 // pred_check
    _
  $region3: #{my_ensemble_forward.1} parent=0 // pred_check_branch
    %9 = sbr.rel (0) target = $region5
  $region4: #{my_ensemble_forward.1} parent=0 // pred_region
    _
  $region5: #{my_ensemble_forward.1} parent=0 // pred_fallthru
    _
  // Predicated region
  $region6: #{my_ensemble_forward.1} parent=0 // pred_check
    _
  $region7: #{my_ensemble_forward.1} parent=0 // pred_check_branch
    %11 = sbr.rel (0) target = $region9
  $region8: #{my_ensemble_forward.1} parent=0 // pred_region
    _
  $region9: #{my_ensemble_forward.1} parent=0 // pred_fallthru
    _
  // Predicated region
  $region10: #{my_ensemble_forward.1} parent=0 // pred_check
    _
  $region11: #{my_ensemble_forward.1} parent=0 // pred_check_branch
    %13 = sbr.rel (0) target = $region13
  $region12: #{my_ensemble_forward.1} parent=0 // pred_region
    _
  $region13: #{my_ensemble_forward.1} parent=0 // pred_fallthru
    _
  %v15 = vlaneseq
  %v16 = vshrl.u32 %v15, 7
  %v17 = vadd.s32 %v16, 8
  %v18 = vadd.s32 %v16, 16
  %v19 = vadd.s32 %v16, 24
  %vm20 = vcmp.lt.s32.totalorder %v16, 0
  %v21 = vsub.s32 0, %v16
  %v22 = vsel %vm20, %v21, %v16
  %v23 = vshrl.u32 %v22, 4
  %v24 = vand.u32 %v22, 15
  %v25 = vsub.s32 0, %v24
  %v26 = vsel %vm20, %v25, %v24
  %vm27 = vcmp.lt.s32.totalorder %v17, 0
  %v28 = vsub.s32 0, %v17
  %v29 = vsel %vm27, %v28, %v17
  %v30 = vshrl.u32 %v29, 4
  %v31 = vand.u32 %v29, 15
  %v32 = vsub.s32 0, %v31
  %v33 = vsel %vm27, %v32, %v31
  %vm34 = vcmp.lt.s32.totalorder %v18, 0
  %v35 = vsub.s32 0, %v18
  %v36 = vsel %vm34, %v35, %v18
  %v37 = vshrl.u32 %v36, 4
  %v38 = vand.u32 %v36, 15
  %v39 = vsub.s32 0, %v38
  %v40 = vsel %vm34, %v39, %v38
  %vm41 = vcmp.lt.s32.totalorder %v19, 0
  %v42 = vsub.s32 0, %v19
  %v43 = vsel %vm41, %v42, %v19
  %v44 = vshrl.u32 %v43, 4
  %v45 = vand.u32 %v43, 15
  %v46 = vsub.s32 0, %v45
  %v47 = vsel %vm41, %v46, %v45
  %vm48 = vcmp.ne.s32.totalorder %v26, 0
  %vm49 = vcmp.ne.s32.totalorder %v33, 0
  %vm50 = vcmp.ne.s32.totalorder %v40, 0
  %vm51 = vcmp.ne.s32.totalorder %v47, 0
  %vm52 = vcmp.lt.s32.totalorder %v26, 0
  %vm53 = vcmp.lt.s32.totalorder %v33, 0
  %vm54 = vcmp.lt.s32.totalorder %v40, 0
  %vm55 = vcmp.lt.s32.totalorder %v47, 0
  %vm56 = vmand %vm52, %vm48
  %vm57 = vmand %vm53, %vm49
  %vm58 = vmand %vm54, %vm50
  %vm59 = vmand %vm55, %vm51
  %v60 = vadd.s32 %v26, 16
  %v61 = vadd.s32 %v33, 16
  %v62 = vadd.s32 %v40, 16
  %v63 = vadd.s32 %v47, 16
  %v64 = vsel %vm56, %v60, %v26
  %v65 = vsel %vm57, %v61, %v33
  %v66 = vsel %vm58, %v62, %v40
  %v67 = vsel %vm59, %v63, %v47
  %vm68 = vcmp.eq.s32.totalorder %v64, 0
  %vm69 = vcmp.eq.s32.totalorder %v65, 0
  %vm70 = vcmp.eq.s32.totalorder %v66, 0
  %vm71 = vcmp.eq.s32.totalorder %v67, 0
  %vm72 = vcmp.eq.s32.totalorder %v64, 15
  %vm73 = vcmp.eq.s32.totalorder %v65, 15
  %vm74 = vcmp.eq.s32.totalorder %v66, 15
  %vm75 = vcmp.eq.s32.totalorder %v67, 15
  %v76 = vld [vmem:[%s0] sm:$0xff]
  %v77 = vld [vmem:[%s0 + $0x8] sm:$0xff]
  %v78 = vld [vmem:[%s0 + $0x10] sm:$0xff]
  %v79 = vld [vmem:[%s0 + $0x18] sm:$0xff]
  %v80 = vpack.c.bf16 %v77, %v76
  %v81 = vpack.c.bf16 %v79, %v78
  %v82 = vld [vmem:[%s1 + $0x60] sm:$0x1]
  %v83 = vunpack.c.l.bf16 %v82
  %v84 = vld [vmem:[%s1] sm:$0xf]
  %v85 = vld [vmem:[%s1 + $0x4] sm:$0xf]
  %v86 = vld [vmem:[%s1 + $0x8] sm:$0xf]
  %v87 = vld [vmem:[%s1 + $0xc] sm:$0xf]
  %v88 = vld [vmem:[%s1 + $0x10] sm:$0xf]
  %v89 = vld [vmem:[%s1 + $0x14] sm:$0xf]
  %v90 = vld [vmem:[%s1 + $0x18] sm:$0xf]
  %v91 = vld [vmem:[%s1 + $0x1c] sm:$0xf]
  %v100 = vunpack.c.l.b16 %v84
  %v101 = vunpack.c.l.b16 %v85
  %v102 = vunpack.c.l.b16 %v86
  %v103 = vunpack.c.l.b16 %v87
  %v104 = vunpack.c.l.b16 %v88
  %v105 = vunpack.c.l.b16 %v89
  %v106 = vunpack.c.l.b16 %v90
  %v107 = vunpack.c.l.b16 %v91
  %v108 = vpack.c.b16 %v101, %v100
  %v109 = vpack.c.b16 %v103, %v102
  %v110 = vpack.c.b16 %v105, %v104
  %v111 = vpack.c.b16 %v107, %v106
  %vm116 = vcmask 523264
  %v118 = vsel %vm116, %v80, 0
  %v121 = vsel %vm116, %v81, 0
  %123 = vmatprep.subr.bf16.mxu0 0
  %124 = vmatpush1.bf16.msra.mxu0 %v108
  %125 = vmatprep.subr.bf16.mxu0 0
  %126 = vmatpush1.bf16.msra.mxu0 %v109
  %127 = vmatprep.subr.bf16.mxu0 0
  %128 = vmatpush1.bf16.msra.mxu0 %v110
  %129 = vmatprep.subr.bf16.mxu0 0
  %130 = vmatpush1.bf16.msra.mxu0 %v111
  %131 = vmatprep.subr.bf16.mxu0 0
  %132 = vmatpush1.bf16.msra.mxu0 0
  %133 = vmatprep.subr.bf16.mxu0 0
  %134 = vmatpush1.bf16.msra.mxu0 0
  %135 = vmatprep.subr.bf16.mxu0 0
  %136 = vmatpush1.bf16.msra.mxu0 0
  %137 = vmatprep.subr.bf16.mxu0 0
  %138 = vmatpush1.bf16.msra.mxu0 0
  %139 = vmatprep.subr.bf16.mxu0 0
  %140 = vmatpush1.bf16.msra.mxu0 0
  %141 = vmatprep.subr.bf16.mxu0 0
  %142 = vmatpush1.bf16.msra.mxu0 0
  %143 = vmatprep.subr.bf16.mxu0 0
  %144 = vmatpush1.bf16.msra.mxu0 0
  %145 = vmatprep.subr.bf16.mxu0 0
  %146 = vmatpush1.bf16.msra.mxu0 0
  %147 = vmatprep.subr.bf16.mxu0 0
  %148 = vmatpush1.bf16.msra.mxu0 0
  %149 = vmatprep.subr.bf16.mxu0 0
  %150 = vmatpush1.bf16.msra.mxu0 0
  %151 = vmatprep.subr.bf16.mxu0 0
  %152 = vmatpush1.bf16.msra.mxu0 0
  %153 = vmatprep.subr.bf16.mxu0 0
  %154 = vmatpush1.bf16.msra.mxu0 0
  %155 = vmatprep.mubr.bf16.mxu0 0
  %156 = vmatmul.mubr.bf16.gmra.mrb[0].mxu0 %v118
  %v157 = vpop.f32.mrb[0].mxu0
  %v158 = vadd.f32 0.0, %v157
  %v159 = vpop.f32.mrb[0].mxu0
  %v160 = vpop.f32.mrb[0].mxu0
  %v161 = vadd.f32 0.0, %v160
  %v162 = vpop.f32.mrb[0].mxu0
  %163 = vmatprep.mubr.bf16.mxu0 0
  %164 = vmatmul.mubr.bf16.gmra.mrb[0].mxu0 %v121
  %v165 = vpop.f32.mrb[0].mxu0
  %v166 = vadd.f32 0.0, %v165
  %v167 = vpop.f32.mrb[0].mxu0
  %v168 = vpop.f32.mrb[0].mxu0
  %v169 = vadd.f32 0.0, %v168
  %v170 = vpop.f32.mrb[0].mxu0
  %171 = vdwg.mxu0
  %v172 = vrot.slane %v158, 7
  %v173 = vrot.slane %v161, 7
  %v174 = vrot.slane %v166, 7
  %v175 = vrot.slane %v169, 7
  %vm176 = vcmp.lt.s32.totalorder %v16, 1
  %v177 = vsel %vm176, %v174, %v175
  %v178 = vsel %vm176, %v173, %v174
  %v179 = vsel %vm176, %v172, %v173
  %v180 = vsel %vm176, %v175, %v172
  %v181 = vsel %vm68, 0.0, %v180
  %v182 = vsel %vm69, 0.0, %v179
  %v183 = vsel %vm70, 0.0, %v178
  %v184 = vsel %vm71, 0.0, %v177
  %v185 = vlaneseq
  %v186 = vshrl.u32 %v185, 7
  %v187 = vsub.s32 0, %v186
  %v188 = vrot.slane %v83, %v187
  %v189 = vadd.f32 %v188, %v181
  %v190 = vadd.f32 %v188, %v182
  %v191 = vadd.f32 %v188, %v183
  %v192 = vadd.f32 %v188, %v184
  %v193 = vld [vmem:[%s1 + $0x20] sm:$0xf]
  %v194 = vld [vmem:[%s1 + $0x24] sm:$0xf]
  %v195 = vld [vmem:[%s1 + $0x28] sm:$0xf]
  %v196 = vld [vmem:[%s1 + $0x2c] sm:$0xf]
  %v197 = vld [vmem:[%s1 + $0x30] sm:$0xf]
  %v198 = vld [vmem:[%s1 + $0x34] sm:$0xf]
  %v199 = vld [vmem:[%s1 + $0x38] sm:$0xf]
  %v200 = vld [vmem:[%s1 + $0x3c] sm:$0xf]
  %v209 = vunpack.c.l.b16 %v193
  %v210 = vunpack.c.l.b16 %v194
  %v211 = vunpack.c.l.b16 %v195
  %v212 = vunpack.c.l.b16 %v196
  %v213 = vunpack.c.l.b16 %v197
  %v214 = vunpack.c.l.b16 %v198
  %v215 = vunpack.c.l.b16 %v199
  %v216 = vunpack.c.l.b16 %v200
  %v217 = vpack.c.b16 %v210, %v209
  %v218 = vpack.c.b16 %v212, %v211
  %v219 = vpack.c.b16 %v214, %v213
  %v220 = vpack.c.b16 %v216, %v215
  %225 = vmatprep.subr.bf16.mxu0 0
  %226 = vmatpush1.bf16.msra.mxu0 %v217
  %227 = vmatprep.subr.bf16.mxu0 0
  %228 = vmatpush1.bf16.msra.mxu0 %v218
  %229 = vmatprep.subr.bf16.mxu0 0
  %230 = vmatpush1.bf16.msra.mxu0 %v219
  %231 = vmatprep.subr.bf16.mxu0 0
  %232 = vmatpush1.bf16.msra.mxu0 %v220
  %233 = vmatprep.subr.bf16.mxu0 0
  %234 = vmatpush1.bf16.msra.mxu0 0
  %235 = vmatprep.subr.bf16.mxu0 0
  %236 = vmatpush1.bf16.msra.mxu0 0
  %237 = vmatprep.subr.bf16.mxu0 0
  %238 = vmatpush1.bf16.msra.mxu0 0
  %239 = vmatprep.subr.bf16.mxu0 0
  %240 = vmatpush1.bf16.msra.mxu0 0
  %241 = vmatprep.subr.bf16.mxu0 0
  %242 = vmatpush1.bf16.msra.mxu0 0
  %243 = vmatprep.subr.bf16.mxu0 0
  %244 = vmatpush1.bf16.msra.mxu0 0
  %245 = vmatprep.subr.bf16.mxu0 0
  %246 = vmatpush1.bf16.msra.mxu0 0
  %247 = vmatprep.subr.bf16.mxu0 0
  %248 = vmatpush1.bf16.msra.mxu0 0
  %249 = vmatprep.subr.bf16.mxu0 0
  %250 = vmatpush1.bf16.msra.mxu0 0
  %251 = vmatprep.subr.bf16.mxu0 0
  %252 = vmatpush1.bf16.msra.mxu0 0
  %253 = vmatprep.subr.bf16.mxu0 0
  %254 = vmatpush1.bf16.msra.mxu0 0
  %255 = vmatprep.subr.bf16.mxu0 0
  %256 = vmatpush1.bf16.msra.mxu0 0
  %257 = vmatprep.mubr.bf16.mxu0 0
  %258 = vmatmul.mubr.bf16.gmra.mrb[0].mxu0 %v118
  %v259 = vpop.f32.mrb[0].mxu0
  %v260 = vadd.f32 0.0, %v259
  %v261 = vpop.f32.mrb[0].mxu0
  %v262 = vpop.f32.mrb[0].mxu0
  %v263 = vadd.f32 0.0, %v262
  %v264 = vpop.f32.mrb[0].mxu0
  %265 = vmatprep.mubr.bf16.mxu0 0
  %266 = vmatmul.mubr.bf16.gmra.mrb[0].mxu0 %v121
  %v267 = vpop.f32.mrb[0].mxu0
  %v268 = vadd.f32 0.0, %v267
  %v269 = vpop.f32.mrb[0].mxu0
  %v270 = vpop.f32.mrb[0].mxu0
  %v271 = vadd.f32 0.0, %v270
  %v272 = vpop.f32.mrb[0].mxu0
  %273 = vdwg.mxu0
  %v274 = vadd.f32 %v189, %v260
  %v275 = vadd.f32 %v190, %v263
  %v276 = vadd.f32 %v191, %v268
  %v277 = vadd.f32 %v192, %v271
  %v278 = vld [vmem:[%s1 + $0x40] sm:$0xf]
  %v279 = vld [vmem:[%s1 + $0x44] sm:$0xf]
  %v280 = vld [vmem:[%s1 + $0x48] sm:$0xf]
  %v281 = vld [vmem:[%s1 + $0x4c] sm:$0xf]
  %v282 = vld [vmem:[%s1 + $0x50] sm:$0xf]
  %v283 = vld [vmem:[%s1 + $0x54] sm:$0xf]
  %v284 = vld [vmem:[%s1 + $0x58] sm:$0xf]
  %v285 = vld [vmem:[%s1 + $0x5c] sm:$0xf]
  %v294 = vunpack.c.l.b16 %v278
  %v295 = vunpack.c.l.b16 %v279
  %v296 = vunpack.c.l.b16 %v280
  %v297 = vunpack.c.l.b16 %v281
  %v298 = vunpack.c.l.b16 %v282
  %v299 = vunpack.c.l.b16 %v283
  %v300 = vunpack.c.l.b16 %v284
  %v301 = vunpack.c.l.b16 %v285
  %v302 = vpack.c.b16 %v295, %v294
  %v303 = vpack.c.b16 %v297, %v296
  %v304 = vpack.c.b16 %v299, %v298
  %v305 = vpack.c.b16 %v301, %v300
  %310 = vmatprep.subr.bf16.mxu0 0
  %311 = vmatpush1.bf16.msra.mxu0 %v302
  %312 = vmatprep.subr.bf16.mxu0 0
  %313 = vmatpush1.bf16.msra.mxu0 %v303
  %314 = vmatprep.subr.bf16.mxu0 0
  %315 = vmatpush1.bf16.msra.mxu0 %v304
  %316 = vmatprep.subr.bf16.mxu0 0
  %317 = vmatpush1.bf16.msra.mxu0 %v305
  %318 = vmatprep.subr.bf16.mxu0 0
  %319 = vmatpush1.bf16.msra.mxu0 0
  %320 = vmatprep.subr.bf16.mxu0 0
  %321 = vmatpush1.bf16.msra.mxu0 0
  %322 = vmatprep.subr.bf16.mxu0 0
  %323 = vmatpush1.bf16.msra.mxu0 0
  %324 = vmatprep.subr.bf16.mxu0 0
  %325 = vmatpush1.bf16.msra.mxu0 0
  %326 = vmatprep.subr.bf16.mxu0 0
  %327 = vmatpush1.bf16.msra.mxu0 0
  %328 = vmatprep.subr.bf16.mxu0 0
  %329 = vmatpush1.bf16.msra.mxu0 0
  %330 = vmatprep.subr.bf16.mxu0 0
  %331 = vmatpush1.bf16.msra.mxu0 0
  %332 = vmatprep.subr.bf16.mxu0 0
  %333 = vmatpush1.bf16.msra.mxu0 0
  %334 = vmatprep.subr.bf16.mxu0 0
  %335 = vmatpush1.bf16.msra.mxu0 0
  %336 = vmatprep.subr.bf16.mxu0 0
  %337 = vmatpush1.bf16.msra.mxu0 0
  %338 = vmatprep.subr.bf16.mxu0 0
  %339 = vmatpush1.bf16.msra.mxu0 0
  %340 = vmatprep.subr.bf16.mxu0 0
  %341 = vmatpush1.bf16.msra.mxu0 0
  %342 = vmatprep.mubr.bf16.mxu0 0
  %343 = vmatmul.mubr.bf16.gmra.mrb[0].mxu0 %v118
  %v344 = vpop.f32.mrb[0].mxu0
  %v345 = vadd.f32 0.0, %v344
  %v346 = vpop.f32.mrb[0].mxu0
  %v347 = vpop.f32.mrb[0].mxu0
  %v348 = vadd.f32 0.0, %v347
  %v349 = vpop.f32.mrb[0].mxu0
  %350 = vmatprep.mubr.bf16.mxu0 0
  %351 = vmatmul.mubr.bf16.gmra.mrb[0].mxu0 %v121
  %v352 = vpop.f32.mrb[0].mxu0
  %v353 = vadd.f32 0.0, %v352
  %v354 = vpop.f32.mrb[0].mxu0
  %v355 = vpop.f32.mrb[0].mxu0
  %v356 = vadd.f32 0.0, %v355
  %v357 = vpop.f32.mrb[0].mxu0
  %358 = vdwg.mxu0
  %v359 = vrot.slane %v345, 1
  %v360 = vrot.slane %v348, 1
  %v361 = vrot.slane %v353, 1
  %v362 = vrot.slane %v356, 1
  %vm363 = vcmp.lt.s32.totalorder %v16, 7
  %v364 = vsel %vm363, %v361, %v362
  %v365 = vsel %vm363, %v360, %v361
  %v366 = vsel %vm363, %v359, %v360
  %v367 = vsel %vm363, %v362, %v359
  %v368 = vsel %vm72, 0.0, %v366
  %v369 = vsel %vm73, 0.0, %v365
  %v370 = vsel %vm74, 0.0, %v364
  %v371 = vsel %vm75, 0.0, %v367
  %v372 = vadd.f32 %v274, %v368
  %v373 = vadd.f32 %v275, %v369
  %v374 = vadd.f32 %v276, %v370
  %v375 = vadd.f32 %v277, %v371
  %v376 = vmax.f32 %v372, 0.0
  %v377 = vmax.f32 %v373, 0.0
  %v378 = vmax.f32 %v374, 0.0
  %v379 = vmax.f32 %v375, 0.0
  %v380 = vld [vmem:[%s2 + $0xc0] sm:$0x1]
  %v381 = vunpack.c.l.bf16 %v380
  %v382 = vrot.slane %v376, 7
  %v383 = vrot.slane %v377, 7
  %v384 = vrot.slane %v378, 7
  %v385 = vrot.slane %v379, 7
  %v386 = vsel %vm176, %v384, %v385
  %v387 = vsel %vm176, %v383, %v384
  %v388 = vsel %vm176, %v382, %v383
  %v389 = vsel %vm176, %v385, %v382
  %v390 = vsel %vm68, 0.0, %v389
  %v391 = vsel %vm69, 0.0, %v388
  %v392 = vsel %vm70, 0.0, %v387
  %v393 = vsel %vm71, 0.0, %v386
  %v394 = vrot.slane %v376, 1
  %v395 = vrot.slane %v377, 1
  %v396 = vrot.slane %v378, 1
  %v397 = vrot.slane %v379, 1
  %v398 = vsel %vm363, %v396, %v397
  %v399 = vsel %vm363, %v395, %v396
  %v400 = vsel %vm363, %v394, %v395
  %v401 = vsel %vm363, %v397, %v394
  %v402 = vsel %vm72, 0.0, %v400
  %v403 = vsel %vm73, 0.0, %v399
  %v404 = vsel %vm74, 0.0, %v398
  %v405 = vsel %vm75, 0.0, %v401
  %v406 = vpack.c.bf16 %v391, %v390
  %v407 = vpack.c.bf16 %v393, %v392
  %v408 = vld [vmem:[%s2] sm:$0xf]
  %v409 = vld [vmem:[%s2 + $0x4] sm:$0xf]
  %v410 = vld [vmem:[%s2 + $0x8] sm:$0xf]
  %v411 = vld [vmem:[%s2 + $0xc] sm:$0xf]
  %v412 = vld [vmem:[%s2 + $0x10] sm:$0xf]
  %v413 = vld [vmem:[%s2 + $0x14] sm:$0xf]
  %v414 = vld [vmem:[%s2 + $0x18] sm:$0xf]
  %v415 = vld [vmem:[%s2 + $0x1c] sm:$0xf]
  %v416 = vld [vmem:[%s2 + $0x20] sm:$0xf]
  %v417 = vld [vmem:[%s2 + $0x24] sm:$0xf]
  %v418 = vld [vmem:[%s2 + $0x28] sm:$0xf]
  %v419 = vld [vmem:[%s2 + $0x2c] sm:$0xf]
  %v420 = vld [vmem:[%s2 + $0x30] sm:$0xf]
  %v421 = vld [vmem:[%s2 + $0x34] sm:$0xf]
  %v422 = vld [vmem:[%s2 + $0x38] sm:$0xf]
  %v423 = vld [vmem:[%s2 + $0x3c] sm:$0xf]
  %v440 = vunpack.c.l.b16 %v408
  %v441 = vunpack.c.l.b16 %v409
  %v442 = vunpack.c.l.b16 %v410
  %v443 = vunpack.c.l.b16 %v411
  %v444 = vunpack.c.l.b16 %v412
  %v445 = vunpack.c.l.b16 %v413
  %v446 = vunpack.c.l.b16 %v414
  %v447 = vunpack.c.l.b16 %v415
  %v448 = vunpack.c.l.b16 %v416
  %v449 = vunpack.c.l.b16 %v417
  %v450 = vunpack.c.l.b16 %v418
  %v451 = vunpack.c.l.b16 %v419
  %v452 = vunpack.c.l.b16 %v420
  %v453 = vunpack.c.l.b16 %v421
  %v454 = vunpack.c.l.b16 %v422
  %v455 = vunpack.c.l.b16 %v423
  %v456 = vpack.c.b16 %v441, %v440
  %v457 = vpack.c.b16 %v443, %v442
  %v458 = vpack.c.b16 %v445, %v444
  %v459 = vpack.c.b16 %v447, %v446
  %v460 = vpack.c.b16 %v449, %v448
  %v461 = vpack.c.b16 %v451, %v450
  %v462 = vpack.c.b16 %v453, %v452
  %v463 = vpack.c.b16 %v455, %v454
  %472 = vmatprep.subr.bf16.mxu0 0
  %473 = vmatpush1.bf16.msra.mxu0 %v456
  %474 = vmatprep.subr.bf16.mxu0 0
  %475 = vmatpush1.bf16.msra.mxu0 %v457
  %476 = vmatprep.subr.bf16.mxu0 0
  %477 = vmatpush1.bf16.msra.mxu0 %v458
  %478 = vmatprep.subr.bf16.mxu0 0
  %479 = vmatpush1.bf16.msra.mxu0 %v459
  %480 = vmatprep.subr.bf16.mxu0 0
  %481 = vmatpush1.bf16.msra.mxu0 %v460
  %482 = vmatprep.subr.bf16.mxu0 0
  %483 = vmatpush1.bf16.msra.mxu0 %v461
  %484 = vmatprep.subr.bf16.mxu0 0
  %485 = vmatpush1.bf16.msra.mxu0 %v462
  %486 = vmatprep.subr.bf16.mxu0 0
  %487 = vmatpush1.bf16.msra.mxu0 %v463
  %488 = vmatprep.subr.bf16.mxu0 0
  %489 = vmatpush1.bf16.msra.mxu0 0
  %490 = vmatprep.subr.bf16.mxu0 0
  %491 = vmatpush1.bf16.msra.mxu0 0
  %492 = vmatprep.subr.bf16.mxu0 0
  %493 = vmatpush1.bf16.msra.mxu0 0
  %494 = vmatprep.subr.bf16.mxu0 0
  %495 = vmatpush1.bf16.msra.mxu0 0
  %496 = vmatprep.subr.bf16.mxu0 0
  %497 = vmatpush1.bf16.msra.mxu0 0
  %498 = vmatprep.subr.bf16.mxu0 0
  %499 = vmatpush1.bf16.msra.mxu0 0
  %500 = vmatprep.subr.bf16.mxu0 0
  %501 = vmatpush1.bf16.msra.mxu0 0
  %502 = vmatprep.subr.bf16.mxu0 0
  %503 = vmatpush1.bf16.msra.mxu0 0
  %504 = vmatprep.mubr.bf16.mxu0 0
  %505 = vmatmul.mubr.bf16.gmra.mrb[0].mxu0 %v406
  %v506 = vpop.f32.mrb[0].mxu0
  %v507 = vadd.f32 0.0, %v506
  %v508 = vpop.f32.mrb[0].mxu0
  %v509 = vpop.f32.mrb[0].mxu0
  %v510 = vadd.f32 0.0, %v509
  %v511 = vpop.f32.mrb[0].mxu0
  %512 = vmatprep.mubr.bf16.mxu0 0
  %513 = vmatmul.mubr.bf16.gmra.mrb[0].mxu0 %v407
  %v514 = vpop.f32.mrb[0].mxu0
  %v515 = vadd.f32 0.0, %v514
  %v516 = vpop.f32.mrb[0].mxu0
  %v517 = vpop.f32.mrb[0].mxu0
  %v518 = vadd.f32 0.0, %v517
  %v519 = vpop.f32.mrb[0].mxu0
  %520 = vdwg.mxu0
  %v521 = vlaneseq
  %v522 = vshrl.u32 %v521, 7
  %v523 = vsub.s32 0, %v522
  %v524 = vrot.slane %v381, %v523
  %v525 = vadd.f32 %v524, %v507
  %v526 = vadd.f32 %v524, %v510
  %v527 = vadd.f32 %v524, %v515
  %v528 = vadd.f32 %v524, %v518
  %v529 = vpack.c.bf16 %v377, %v376
  %v530 = vpack.c.bf16 %v379, %v378
  %v531 = vld [vmem:[%s2 + $0x40] sm:$0xf]
  %v532 = vld [vmem:[%s2 + $0x44] sm:$0xf]
  %v533 = vld [vmem:[%s2 + $0x48] sm:$0xf]
  %v534 = vld [vmem:[%s2 + $0x4c] sm:$0xf]
  %v535 = vld [vmem:[%s2 + $0x50] sm:$0xf]
  %v536 = vld [vmem:[%s2 + $0x54] sm:$0xf]
  %v537 = vld [vmem:[%s2 + $0x58] sm:$0xf]
  %v538 = vld [vmem:[%s2 + $0x5c] sm:$0xf]
  %v539 = vld [vmem:[%s2 + $0x60] sm:$0xf]
  %v540 = vld [vmem:[%s2 + $0x64] sm:$0xf]
  %v541 = vld [vmem:[%s2 + $0x68] sm:$0xf]
  %v542 = vld [vmem:[%s2 + $0x6c] sm:$0xf]
  %v543 = vld [vmem:[%s2 + $0x70] sm:$0xf]
  %v544 = vld [vmem:[%s2 + $0x74] sm:$0xf]
  %v545 = vld [vmem:[%s2 + $0x78] sm:$0xf]
  %v546 = vld [vmem:[%s2 + $0x7c] sm:$0xf]
  %v563 = vunpack.c.l.b16 %v531
  %v564 = vunpack.c.l.b16 %v532
  %v565 = vunpack.c.l.b16 %v533
  %v566 = vunpack.c.l.b16 %v534
  %v567 = vunpack.c.l.b16 %v535
  %v568 = vunpack.c.l.b16 %v536
  %v569 = vunpack.c.l.b16 %v537
  %v570 = vunpack.c.l.b16 %v538
  %v571 = vunpack.c.l.b16 %v539
  %v572 = vunpack.c.l.b16 %v540
  %v573 = vunpack.c.l.b16 %v541
  %v574 = vunpack.c.l.b16 %v542
  %v575 = vunpack.c.l.b16 %v543
  %v576 = vunpack.c.l.b16 %v544
  %v577 = vunpack.c.l.b16 %v545
  %v578 = vunpack.c.l.b16 %v546
  %v579 = vpack.c.b16 %v564, %v563
  %v580 = vpack.c.b16 %v566, %v565
  %v581 = vpack.c.b16 %v568, %v567
  %v582 = vpack.c.b16 %v570, %v569
  %v583 = vpack.c.b16 %v572, %v571
  %v584 = vpack.c.b16 %v574, %v573
  %v585 = vpack.c.b16 %v576, %v575
  %v586 = vpack.c.b16 %v578, %v577
  %595 = vmatprep.subr.bf16.mxu0 0
  %596 = vmatpush1.bf16.msra.mxu0 %v579
  %597 = vmatprep.subr.bf16.mxu0 0
  %598 = vmatpush1.bf16.msra.mxu0 %v580
  %599 = vmatprep.subr.bf16.mxu0 0
  %600 = vmatpush1.bf16.msra.mxu0 %v581
  %601 = vmatprep.subr.bf16.mxu0 0
  %602 = vmatpush1.bf16.msra.mxu0 %v582
  %603 = vmatprep.subr.bf16.mxu0 0
  %604 = vmatpush1.bf16.msra.mxu0 %v583
  %605 = vmatprep.subr.bf16.mxu0 0
  %606 = vmatpush1.bf16.msra.mxu0 %v584
  %607 = vmatprep.subr.bf16.mxu0 0
  %608 = vmatpush1.bf16.msra.mxu0 %v585
  %609 = vmatprep.subr.bf16.mxu0 0
  %610 = vmatpush1.bf16.msra.mxu0 %v586
  %611 = vmatprep.subr.bf16.mxu0 0
  %612 = vmatpush1.bf16.msra.mxu0 0
  %613 = vmatprep.subr.bf16.mxu0 0
  %614 = vmatpush1.bf16.msra.mxu0 0
  %615 = vmatprep.subr.bf16.mxu0 0
  %616 = vmatpush1.bf16.msra.mxu0 0
  %617 = vmatprep.subr.bf16.mxu0 0
  %618 = vmatpush1.bf16.msra.mxu0 0
  %619 = vmatprep.subr.bf16.mxu0 0
  %620 = vmatpush1.bf16.msra.mxu0 0
  %621 = vmatprep.subr.bf16.mxu0 0
  %622 = vmatpush1.bf16.msra.mxu0 0
  %623 = vmatprep.subr.bf16.mxu0 0
  %624 = vmatpush1.bf16.msra.mxu0 0
  %625 = vmatprep.subr.bf16.mxu0 0
  %626 = vmatpush1.bf16.msra.mxu0 0
  %627 = vmatprep.mubr.bf16.mxu0 0
  %628 = vmatmul.mubr.bf16.gmra.mrb[0].mxu0 %v529
  %v629 = vpop.f32.mrb[0].mxu0
  %v630 = vadd.f32 0.0, %v629
  %v631 = vpop.f32.mrb[0].mxu0
  %v632 = vpop.f32.mrb[0].mxu0
  %v633 = vadd.f32 0.0, %v632
  %v634 = vpop.f32.mrb[0].mxu0
  %635 = vmatprep.mubr.bf16.mxu0 0
  %636 = vmatmul.mubr.bf16.gmra.mrb[0].mxu0 %v530
  %v637 = vpop.f32.mrb[0].mxu0
  %v638 = vadd.f32 0.0, %v637
  %v639 = vpop.f32.mrb[0].mxu0
  %v640 = vpop.f32.mrb[0].mxu0
  %v641 = vadd.f32 0.0, %v640
  %v642 = vpop.f32.mrb[0].mxu0
  %643 = vdwg.mxu0
  %v644 = vadd.f32 %v525, %v630
  %v645 = vadd.f32 %v526, %v633
  %v646 = vadd.f32 %v527, %v638
  %v647 = vadd.f32 %v528, %v641
  %v648 = vpack.c.bf16 %v403, %v402
  %v649 = vpack.c.bf16 %v405, %v404
  %v650 = vld [vmem:[%s2 + $0x80] sm:$0xf]
  %v651 = vld [vmem:[%s2 + $0x84] sm:$0xf]
  %v652 = vld [vmem:[%s2 + $0x88] sm:$0xf]
  %v653 = vld [vmem:[%s2 + $0x8c] sm:$0xf]
  %v654 = vld [vmem:[%s2 + $0x90] sm:$0xf]
  %v655 = vld [vmem:[%s2 + $0x94] sm:$0xf]
  %v656 = vld [vmem:[%s2 + $0x98] sm:$0xf]
  %v657 = vld [vmem:[%s2 + $0x9c] sm:$0xf]
  %v658 = vld [vmem:[%s2 + $0xa0] sm:$0xf]
  %v659 = vld [vmem:[%s2 + $0xa4] sm:$0xf]
  %v660 = vld [vmem:[%s2 + $0xa8] sm:$0xf]
  %v661 = vld [vmem:[%s2 + $0xac] sm:$0xf]
  %v662 = vld [vmem:[%s2 + $0xb0] sm:$0xf]
  %v663 = vld [vmem:[%s2 + $0xb4] sm:$0xf]
  %v664 = vld [vmem:[%s2 + $0xb8] sm:$0xf]
  %v665 = vld [vmem:[%s2 + $0xbc] sm:$0xf]
  %v682 = vunpack.c.l.b16 %v650
  %v683 = vunpack.c.l.b16 %v651
  %v684 = vunpack.c.l.b16 %v652
  %v685 = vunpack.c.l.b16 %v653
  %v686 = vunpack.c.l.b16 %v654
  %v687 = vunpack.c.l.b16 %v655
  %v688 = vunpack.c.l.b16 %v656
  %v689 = vunpack.c.l.b16 %v657
  %v690 = vunpack.c.l.b16 %v658
  %v691 = vunpack.c.l.b16 %v659
  %v692 = vunpack.c.l.b16 %v660
  %v693 = vunpack.c.l.b16 %v661
  %v694 = vunpack.c.l.b16 %v662
  %v695 = vunpack.c.l.b16 %v663
  %v696 = vunpack.c.l.b16 %v664
  %v697 = vunpack.c.l.b16 %v665
  %v698 = vpack.c.b16 %v683, %v682
  %v699 = vpack.c.b16 %v685, %v684
  %v700 = vpack.c.b16 %v687, %v686
  %v701 = vpack.c.b16 %v689, %v688
  %v702 = vpack.c.b16 %v691, %v690
  %v703 = vpack.c.b16 %v693, %v692
  %v704 = vpack.c.b16 %v695, %v694
  %v705 = vpack.c.b16 %v697, %v696
  %714 = vmatprep.subr.bf16.mxu0 0
  %715 = vmatpush1.bf16.msra.mxu0 %v698
  %716 = vmatprep.subr.bf16.mxu0 0
  %717 = vmatpush1.bf16.msra.mxu0 %v699
  %718 = vmatprep.subr.bf16.mxu0 0
  %719 = vmatpush1.bf16.msra.mxu0 %v700
  %720 = vmatprep.subr.bf16.mxu0 0
  %721 = vmatpush1.bf16.msra.mxu0 %v701
  %722 = vmatprep.subr.bf16.mxu0 0
  %723 = vmatpush1.bf16.msra.mxu0 %v702
  %724 = vmatprep.subr.bf16.mxu0 0
  %725 = vmatpush1.bf16.msra.mxu0 %v703
  %726 = vmatprep.subr.bf16.mxu0 0
  %727 = vmatpush1.bf16.msra.mxu0 %v704
  %728 = vmatprep.subr.bf16.mxu0 0
  %729 = vmatpush1.bf16.msra.mxu0 %v705
  %730 = vmatprep.subr.bf16.mxu0 0
  %731 = vmatpush1.bf16.msra.mxu0 0
  %732 = vmatprep.subr.bf16.mxu0 0
  %733 = vmatpush1.bf16.msra.mxu0 0
  %734 = vmatprep.subr.bf16.mxu0 0
  %735 = vmatpush1.bf16.msra.mxu0 0
  %736 = vmatprep.subr.bf16.mxu0 0
  %737 = vmatpush1.bf16.msra.mxu0 0
  %738 = vmatprep.subr.bf16.mxu0 0
  %739 = vmatpush1.bf16.msra.mxu0 0
  %740 = vmatprep.subr.bf16.mxu0 0
  %741 = vmatpush1.bf16.msra.mxu0 0
  %742 = vmatprep.subr.bf16.mxu0 0
  %743 = vmatpush1.bf16.msra.mxu0 0
  %744 = vmatprep.subr.bf16.mxu0 0
  %745 = vmatpush1.bf16.msra.mxu0 0
  %746 = vmatprep.mubr.bf16.mxu0 0
  %747 = vmatmul.mubr.bf16.gmra.mrb[0].mxu0 %v648
  %v748 = vpop.f32.mrb[0].mxu0
  %v749 = vadd.f32 0.0, %v748
  %v750 = vpop.f32.mrb[0].mxu0
  %v751 = vpop.f32.mrb[0].mxu0
  %v752 = vadd.f32 0.0, %v751
  %v753 = vpop.f32.mrb[0].mxu0
  %754 = vmatprep.mubr.bf16.mxu0 0
  %755 = vmatmul.mubr.bf16.gmra.mrb[0].mxu0 %v649
  %v756 = vpop.f32.mrb[0].mxu0
  %v757 = vadd.f32 0.0, %v756
  %v758 = vpop.f32.mrb[0].mxu0
  %v759 = vpop.f32.mrb[0].mxu0
  %v760 = vadd.f32 0.0, %v759
  %v761 = vpop.f32.mrb[0].mxu0
  %762 = vdwg.mxu0
  %v763 = vadd.f32 %v644, %v749
  %v764 = vadd.f32 %v645, %v752
  %v765 = vadd.f32 %v646, %v757
  %v766 = vadd.f32 %v647, %v760
  %767 = vst.msk [vmem:[%s3] sm:$0xff] %vm116, %v763
  %768 = vst.msk [vmem:[%s3 + $0x8] sm:$0xff] %vm116, %v764
  %769 = vst.msk [vmem:[%s3 + $0x10] sm:$0xff] %vm116, %v765
  %770 = vst.msk [vmem:[%s3 + $0x18] sm:$0xff] %vm116, %v766
  // Predicated region
  $region14: #{my_ensemble_forward.1} parent=0 // pred_check
    _
  $region15: #{my_ensemble_forward.1} parent=0 // pred_check_branch
    %772 = sbr.rel (0) target = $region17
  $region16: #{my_ensemble_forward.1} parent=0 // pred_region
    _
  $region17: #{my_ensemble_forward.1} parent=0 // pred_fallthru
    _
  // Predicated region
  $region18: #{my_ensemble_forward.1} parent=0 // pred_check
    _
  $region19: #{my_ensemble_forward.1} parent=0 // pred_check_branch
    %774 = sbr.rel (0) target = $region21
  $region20: #{my_ensemble_forward.1} parent=0 // pred_region
    _
  $region21: #{my_ensemble_forward.1} parent=0 // pred_fallthru
    _

</llo_original>
